<compile_context>
chip_gen: v7x
topology: tpu7x:2x2x1
jax: 0.10.0
libtpu: 0.0.40
codegen_flags: <defaults>
</compile_context>

<pallas_src>
import functools
import math
import numpy as np
import jax
import jax.numpy as jnp
from jax import lax
from jax.experimental import pallas as pl
from jax.experimental.pallas import tpu as pltpu


# ---------------------------------------------------------------------------
# Parameter construction (mirrors HighOrderActivationA.__init__ exactly)
# ---------------------------------------------------------------------------
def cartesian_power(values, power):
    if power == 0:
        return np.zeros((1, 0), dtype=np.float32)
    A = cartesian_power(values, power - 1)
    return np.concatenate(
        [np.concatenate([A, np.full((A.shape[0], 1), x, dtype=np.float32)], axis=1)
         for x in values],
        axis=0,
    )


def init_params(arity, input_groups, out_dim):
    # __init__ overwrites the randn init with max(param_coords, dim=1)
    coords = cartesian_power([0.0, 1.0], arity)            # [2**arity, arity]
    mx = coords.max(axis=1)                                 # [2**arity]
    params = np.broadcast_to(
        mx[None, :, None], (input_groups, 2 ** arity, out_dim)
    ).astype(np.float32)
    return jnp.asarray(params)


def _round_up(x, m):
    return (x + m - 1) // m * m


def _cdiv(a, b):
    return (a + b - 1) // b


# ---------------------------------------------------------------------------
# Pallas kernel
# ---------------------------------------------------------------------------
def _hoa_kernel(x_ref, sel_ref, pbd_ref, o_ref, *, arity, P, RGP):
    # x_ref:   (tn, R*G*arity)          folded input rows
    # sel_ref: (R*G*arity, arity*RGP)   0/1 broadcast-selection matrix (resident)
    # pbd_ref: (RGP, RGD_pad)           folded block-diagonal params   (resident)
    # o_ref:   (tn, RGD_pad)
    x = x_ref[...]
    tn = x.shape[0]

    # One MXU matmul replicates each within-group input `a` across that group's
    # P mask lanes:  xa_all[:, a*RGP + c] = x[:, (c // P)*arity + a]
    xa_all = jnp.dot(x, sel_ref[...], preferred_element_type=jnp.float32)

    # Per-lane (1, RGP) mask metadata; jnp.where broadcasts it across sublanes.
    col = lax.broadcasted_iota(jnp.int32, (1, RGP), 1)
    p_of_c = col & (P - 1)                       # mask index within group

    BIG = jnp.float32(1.0e30)                    # far below f32 max: mn - mx stays finite
    mn = jnp.full((tn, RGP), BIG, jnp.float32)   # min over inputs inside the mask
    mx = jnp.full((tn, RGP), -BIG, jnp.float32)  # max over inputs outside the mask
    for a in range(arity):
        xa = xa_all[:, a * RGP:(a + 1) * RGP]    # 128-aligned static slice (RGP % 128 == 0)
        bit = ((p_of_c >> a) & 1) == 1           # (1, RGP)
        mn = jnp.where(bit, jnp.minimum(mn, xa), mn)
        mx = jnp.where(bit, mx, jnp.maximum(mx, xa))

    # Simplex-interpolation weights (equivalent to the torch sort/diff/gather):
    #   proper mask S:  relu(min_S x - max_{~S} x)
    #   full mask:      min x   (may be negative, no relu)
    #   empty mask:     weight ends up ~BIG here, but its params rows are zeroed in
    #                   the wrapper, so its matmul contribution is exactly 0.
    w = jnp.maximum(mn - mx, 0.0)
    w = jnp.where(p_of_c == (P - 1), mn, w)

    o_ref[...] = jnp.dot(w, pbd_ref[...],
                         preferred_element_type=jnp.float32).astype(o_ref.dtype)


def high_order_activation_a(X, params, arity, input_groups, out_dim, tn=None):
    N = X.shape[0]
    G, P, D = input_groups, 2 ** arity, out_dim
    assert X.ndim == 2 and X.shape[1] == G * arity
    assert params.shape == (G, P, D)

    X = X.astype(jnp.float32)
    params = params.astype(jnp.float32)

    # ---- lane-fold factor: R row-groups share the 128 lanes -------------------
    GP = G * P
    R = 128 // math.gcd(GP, 128)          # makes R*G*P a multiple of 128
    if R * GP > 2048:                     # safety cap for very wide groups
        R = max(1, 128 // GP)
    RGP = R * GP
    RGA = R * G * arity
    RGD = R * G * D
    RGD_pad = _round_up(RGD, 128)         # lane-dense (unmasked) output stores

    # ---- folded block-diagonal params, empty-mask rows zeroed ------------------
    pz = params.at[:, 0, :].set(0.0)      # mask 0 (empty set) never contributes
    bd_g = (pz[:, :, None, :] *
            jnp.eye(G, dtype=jnp.float32)[:, None, :, None]).reshape(GP, G * D)
    bd = (bd_g[None, :, None, :] *
          jnp.eye(R, dtype=jnp.float32)[:, None, :, None]).reshape(RGP, RGD)
    if RGD_pad > RGD:
        bd = jnp.pad(bd, ((0, 0), (0, RGD_pad - RGD)))

    # ---- 0/1 broadcast-selection matrix (static, tiny) -------------------------
    sel_np = np.zeros((RGA, arity * RGP), np.float32)
    for rg in range(R * G):
        for a in range(arity):
            base = a * RGP + rg * P
            sel_np[rg * arity + a, base:base + P] = 1.0
    sel = jnp.asarray(sel_np)

    # ---- tiling over folded rows ------------------------------------------------
    rows = _cdiv(N, R)
    if tn is None:
        # Large enough to amortize per-step pipeline overhead, small enough to keep
        # ~>=8 grid steps for big batches (v7x megacore sharding).  Sweepable.
        tn = min(512, max(8, _round_up(_cdiv(rows, 8), 8)))
    tn = max(8, _round_up(tn, 8))
    steps = _cdiv(rows, tn)
    rows_p = steps * tn
    Np = rows_p * R
    Xp = X if Np == N else jnp.pad(X, ((0, Np - N), (0, 0)))
    Xf = Xp.reshape(rows_p, RGA)          # free contiguous reshape

    kernel = functools.partial(_hoa_kernel, arity=arity, P=P, RGP=RGP)
    flops = 2 * rows_p * RGA * (arity * RGP) + 2 * rows_p * RGP * RGD_pad
    bytes_accessed = (rows_p * RGA + rows_p * RGD_pad
                      + RGP * RGD_pad + RGA * arity * RGP) * 4

    # NOTE: jnp.dot uses XLA's default f32 MXU precision (bf16 multi-pass); matches
    # the torch reference well within 1e-4.  Use precision=HIGHEST if bit-parity is
    # ever required.
    out = pl.pallas_call(
        kernel,
        out_shape=jax.ShapeDtypeStruct((rows_p, RGD_pad), jnp.float32),
        grid_spec=pltpu.PrefetchScalarGridSpec(
            num_scalar_prefetch=0,
            grid=(steps,),
            in_specs=[
                pl.BlockSpec((tn, RGA), lambda n: (n, 0)),
                pl.BlockSpec((RGA, arity * RGP), lambda n: (0, 0)),  # resident
                pl.BlockSpec((RGP, RGD_pad), lambda n: (0, 0)),      # resident
            ],
            out_specs=pl.BlockSpec((tn, RGD_pad), lambda n: (n, 0)),
        ),
        compiler_params=pltpu.CompilerParams(
            dimension_semantics=("parallel",),
            vmem_limit_bytes=32 * 1024 * 1024,
        ),
        cost_estimate=pl.CostEstimate(
            flops=int(flops), transcendentals=0,
            bytes_accessed=int(bytes_accessed)),
    )(Xf, sel, bd)

    out = out[:, :RGD].reshape(rows_p * R, G * D)
    return out[:N]


# ---------------------------------------------------------------------------
# Pure-JAX reference mirroring the PyTorch code literally (for verification)
# ---------------------------------------------------------------------------
def high_order_activation_a_ref(X, params, arity, input_groups):
    N = X.shape[0]
    D = params.shape[-1]
    A = X.reshape(N, input_groups, arity)
    A_sort = jnp.sort(A, axis=2)
    A_ind = jnp.argsort(A, axis=2)
    A_diff = A_sort[:, :, 1:] - A_sort[:, :, :-1]
    coef = jnp.concatenate([A_sort[:, :, 0:1], A_diff], axis=2)
    params_A_ind = jnp.flip(
        jnp.cumsum(jnp.flip(2 ** A_ind, axis=2), axis=2), axis=2)
    ind0 = jnp.arange(input_groups)[:, None, None]
    ind1 = jnp.transpose(params_A_ind, (1, 0, 2))
    params_gather = params[ind0, ind1, :]                   # [G, N, arity, D]
    out = jnp.einsum('jikl,ijk->ijl', params_gather, coef)  # [N, G, D]
    return out.reshape(N, input_groups * D)


if __name__ == "__main__":
    key = jax.random.PRNGKey(0)
    kx, kp, kx2, kp2 = jax.random.split(key, 4)

    # Config 1: arity=3, 4 groups, out_dim=32 -> R=4 fold, W width 128, out width 512.
    arity, G, D = 3, 4, 32
    batch = 8
    X = jax.random.normal(kx, (batch, G * arity), dtype=jnp.float32)
    X = X.at[:, :arity].set(jnp.round(X[:, :arity]))        # create some ties

    # (a) module's actual init (degenerate 0/1 params)
    params0 = init_params(arity, G, D)
    out0 = jax.block_until_ready(high_order_activation_a(X, params0, arity, G, D))
    ref0 = high_order_activation_a_ref(X, params0, arity, G)
    assert out0.shape == (batch, G * D)
    assert jnp.allclose(out0, ref0, atol=1e-5, rtol=1e-5), \
        f"max err {jnp.max(jnp.abs(out0 - ref0))}"

    # (b) random params (stronger check: exercises every mask index)
    params1 = jax.random.normal(kp, (G, 2 ** arity, D), dtype=jnp.float32)
    out1 = jax.block_until_ready(high_order_activation_a(X, params1, arity, G, D))
    ref1 = high_order_activation_a_ref(X, params1, arity, G)
    assert jnp.allclose(out1, ref1, atol=1e-4, rtol=1e-4), \
        f"max err {jnp.max(jnp.abs(out1 - ref1))}"

    # Config 2: different arity, non-128 group width (G*P=48 -> R=8 fold),
    # ties + negatives, ragged batch.
    arity2, G2, D2 = 4, 3, 16
    X2 = jnp.round(jax.random.normal(kx2, (6, G2 * arity2), dtype=jnp.float32) * 2.0) / 2.0
    params2 = jax.random.normal(kp2, (G2, 2 ** arity2, D2), dtype=jnp.float32)
    out2 = jax.block_until_ready(high_order_activation_a(X2, params2, arity2, G2, D2))
    ref2 = high_order_activation_a_ref(X2, params2, arity2, G2)
    assert out2.shape == (6, G2 * D2)
    assert jnp.allclose(out2, ref2, atol=1e-4, rtol=1e-4), \
        f"max err {jnp.max(jnp.abs(out2 - ref2))}"

    print("KERNEL_OK")
</pallas_src>

<mosaic_0001>
module attributes {stable_mosaic.version = 11 : i64} {
  func.func @_hoa_kernel(%arg0: i32, %arg1: memref<8x48xf32, #tpu.memory_space<vmem>>, %arg2: memref<48x384xf32, #tpu.memory_space<vmem>>, %arg3: memref<128x512xf32, #tpu.memory_space<vmem>>, %arg4: memref<8x512xf32, #tpu.memory_space<vmem>>) attributes {dimension_semantics = [#tpu.dimension_semantics<parallel>], iteration_bounds = array<i64: 1>, scalar_prefetch = 0 : i64, scratch_operands = 0 : i64, tpu.core_type = #tpu.core_type<tc>, window_params = [{transform_indices = @transform_0, window_bounds = array<i64: 8, 48>}, {pipeline_mode = #tpu.pipeline_mode<synchronous>, transform_indices = @transform_1, window_bounds = array<i64: 48, 384>}, {pipeline_mode = #tpu.pipeline_mode<synchronous>, transform_indices = @transform_2, window_bounds = array<i64: 128, 512>}, {transform_indices = @transform_3, window_bounds = array<i64: 8, 512>}]} {
    %c0 = arith.constant 0 : index
    %c0_0 = arith.constant 0 : index
    %0 = vector.load %arg1[%c0, %c0_0] : memref<8x48xf32, #tpu.memory_space<vmem>>, vector<8x48xf32>
    %c0_1 = arith.constant 0 : index
    %c0_2 = arith.constant 0 : index
    %1 = vector.load %arg2[%c0_1, %c0_2] : memref<48x384xf32, #tpu.memory_space<vmem>>, vector<48x384xf32>
    %cst = arith.constant dense<0.000000e+00> : vector<8x384xf32>
    %2 = tpu.matmul %0, %1, %cst {dimension_numbers = #tpu.dot_dimension_numbers<[1], [0], [0], [1], [0, 0, 1, 1], [], []>} : vector<8x48xf32>, vector<48x384xf32>, vector<8x384xf32> -> vector<8x384xf32>
    %3 = tpu.iota {dimensions = array<i32: 1>} : vector<1x128xi32>
    %c7_i32 = arith.constant 7 : i32
    %4 = vector.broadcast %c7_i32 : i32 to vector<1x128xi32>
    %5 = arith.andi %3, %4 : vector<1x128xi32>
    %cst_3 = arith.constant 1.000000e+30 : f32
    %6 = vector.broadcast %cst_3 : f32 to vector<8x128xf32>
    %cst_4 = arith.constant 0.000000e+00 : f32
    %cst_5 = arith.constant 1.000000e+30 : f32
    %7 = arith.subf %cst_4, %cst_5 : f32
    %8 = vector.broadcast %7 : f32 to vector<8x128xf32>
    %9 = vector.extract_strided_slice %2 {offsets = [0, 0], sizes = [8, 128], strides = [1, 1]} : vector<8x384xf32> to vector<8x128xf32>
    %c0_i32 = arith.constant 0 : i32
    %10 = vector.broadcast %c0_i32 : i32 to vector<1x128xi32>
    %11 = arith.shrsi %5, %10 : vector<1x128xi32>
    %c1_i32 = arith.constant 1 : i32
    %12 = vector.broadcast %c1_i32 : i32 to vector<1x128xi32>
    %13 = arith.andi %11, %12 : vector<1x128xi32>
    %c1_i32_6 = arith.constant 1 : i32
    %14 = vector.broadcast %c1_i32_6 : i32 to vector<1x128xi32>
    %15 = arith.cmpi eq, %13, %14 : vector<1x128xi32>
    %16 = arith.minimumf %6, %9 : vector<8x128xf32>
    %17 = vector.shape_cast %15 : vector<1x128xi1> to vector<1x128xi1>
    %18 = vector.broadcast %17 : vector<1x128xi1> to vector<8x128xi1>
    %19 = arith.select %18, %16, %6 : vector<8x128xi1>, vector<8x128xf32>
    %20 = arith.maximumf %8, %9 : vector<8x128xf32>
    %21 = vector.shape_cast %15 : vector<1x128xi1> to vector<1x128xi1>
    %22 = vector.broadcast %21 : vector<1x128xi1> to vector<8x128xi1>
    %23 = arith.select %22, %8, %20 : vector<8x128xi1>, vector<8x128xf32>
    %24 = vector.extract_strided_slice %2 {offsets = [0, 128], sizes = [8, 128], strides = [1, 1]} : vector<8x384xf32> to vector<8x128xf32>
    %c1_i32_7 = arith.constant 1 : i32
    %25 = vector.broadcast %c1_i32_7 : i32 to vector<1x128xi32>
    %26 = arith.shrsi %5, %25 : vector<1x128xi32>
    %c1_i32_8 = arith.constant 1 : i32
    %27 = vector.broadcast %c1_i32_8 : i32 to vector<1x128xi32>
    %28 = arith.andi %26, %27 : vector<1x128xi32>
    %c1_i32_9 = arith.constant 1 : i32
    %29 = vector.broadcast %c1_i32_9 : i32 to vector<1x128xi32>
    %30 = arith.cmpi eq, %28, %29 : vector<1x128xi32>
    %31 = arith.minimumf %19, %24 : vector<8x128xf32>
    %32 = vector.shape_cast %30 : vector<1x128xi1> to vector<1x128xi1>
    %33 = vector.broadcast %32 : vector<1x128xi1> to vector<8x128xi1>
    %34 = arith.select %33, %31, %19 : vector<8x128xi1>, vector<8x128xf32>
    %35 = arith.maximumf %23, %24 : vector<8x128xf32>
    %36 = vector.shape_cast %30 : vector<1x128xi1> to vector<1x128xi1>
    %37 = vector.broadcast %36 : vector<1x128xi1> to vector<8x128xi1>
    %38 = arith.select %37, %23, %35 : vector<8x128xi1>, vector<8x128xf32>
    %39 = vector.extract_strided_slice %2 {offsets = [0, 256], sizes = [8, 128], strides = [1, 1]} : vector<8x384xf32> to vector<8x128xf32>
    %c2_i32 = arith.constant 2 : i32
    %40 = vector.broadcast %c2_i32 : i32 to vector<1x128xi32>
    %41 = arith.shrsi %5, %40 : vector<1x128xi32>
    %c1_i32_10 = arith.constant 1 : i32
    %42 = vector.broadcast %c1_i32_10 : i32 to vector<1x128xi32>
    %43 = arith.andi %41, %42 : vector<1x128xi32>
    %c1_i32_11 = arith.constant 1 : i32
    %44 = vector.broadcast %c1_i32_11 : i32 to vector<1x128xi32>
    %45 = arith.cmpi eq, %43, %44 : vector<1x128xi32>
    %46 = arith.minimumf %34, %39 : vector<8x128xf32>
    %47 = vector.shape_cast %45 : vector<1x128xi1> to vector<1x128xi1>
    %48 = vector.broadcast %47 : vector<1x128xi1> to vector<8x128xi1>
    %49 = arith.select %48, %46, %34 : vector<8x128xi1>, vector<8x128xf32>
    %50 = arith.maximumf %38, %39 : vector<8x128xf32>
    %51 = vector.shape_cast %45 : vector<1x128xi1> to vector<1x128xi1>
    %52 = vector.broadcast %51 : vector<1x128xi1> to vector<8x128xi1>
    %53 = arith.select %52, %38, %50 : vector<8x128xi1>, vector<8x128xf32>
    %54 = arith.subf %49, %53 : vector<8x128xf32>
    %cst_12 = arith.constant 0.000000e+00 : f32
    %55 = vector.broadcast %cst_12 : f32 to vector<8x128xf32>
    %56 = arith.maximumf %54, %55 : vector<8x128xf32>
    %c7_i32_13 = arith.constant 7 : i32
    %57 = vector.broadcast %c7_i32_13 : i32 to vector<1x128xi32>
    %58 = arith.cmpi eq, %5, %57 : vector<1x128xi32>
    %59 = vector.shape_cast %58 : vector<1x128xi1> to vector<1x128xi1>
    %60 = vector.broadcast %59 : vector<1x128xi1> to vector<8x128xi1>
    %61 = arith.select %60, %49, %56 : vector<8x128xi1>, vector<8x128xf32>
    %c0_14 = arith.constant 0 : index
    %c0_15 = arith.constant 0 : index
    %62 = vector.load %arg3[%c0_14, %c0_15] : memref<128x512xf32, #tpu.memory_space<vmem>>, vector<128x512xf32>
    %cst_16 = arith.constant dense<0.000000e+00> : vector<8x512xf32>
    %63 = tpu.matmul %61, %62, %cst_16 {dimension_numbers = #tpu.dot_dimension_numbers<[1], [0], [0], [1], [0, 0, 1, 1], [], []>} : vector<8x128xf32>, vector<128x512xf32>, vector<8x512xf32> -> vector<8x512xf32>
    %c0_17 = arith.constant 0 : index
    %c0_18 = arith.constant 0 : index
    %64 = vector.load %arg4[%c0_17, %c0_18] : memref<8x512xf32, #tpu.memory_space<vmem>>, vector<8x512xf32>
    tpu.vector_store %arg4[%c0_17, %c0_18], %63 {strides = array<i32>} : memref<8x512xf32, #tpu.memory_space<vmem>>, vector<8x512xf32>,
    return
  }
  func.func @transform_0(%arg0: i32) -> (i32, i32) {
    %c0_i32 = arith.constant 0 : i32
    %c0_i32_0 = arith.constant 0 : i32
    return %arg0, %c0_i32 : i32, i32
  }
  func.func @transform_1(%arg0: i32) -> (i32, i32) {
    %c0_i32 = arith.constant 0 : i32
    %c0_i32_0 = arith.constant 0 : i32
    %c0_i32_1 = arith.constant 0 : i32
    return %c0_i32, %c0_i32_0 : i32, i32
  }
  func.func @transform_2(%arg0: i32) -> (i32, i32) {
    %c0_i32 = arith.constant 0 : i32
    %c0_i32_0 = arith.constant 0 : i32
    %c0_i32_1 = arith.constant 0 : i32
    return %c0_i32, %c0_i32_0 : i32, i32
  }
  func.func @transform_3(%arg0: i32) -> (i32, i32) {
    %c0_i32 = arith.constant 0 : i32
    %c0_i32_0 = arith.constant 0 : i32
    return %arg0, %c0_i32 : i32, i32
  }
}

</mosaic_0001>

<llo_original>
// kernel: tpu_custom_call.1
$region0: #{tpu_custom_call.1}
  #allocation0 [shape = 'u32[]', space=smem, size = 0x4, offset = 0x4, fixed_abs, tag = 'smem constant byte address 0x4 - core index']
  #allocation1 [shape = 'u32[144,128]{1,0:T(1,128)}', space=vmem, size = 0x12000, scoped, tag = 'internal scratch']
  %s0 = inlined_call_operand.hbm [shape: f32[8,48], index: 0, kind: input, shape index: {}]
  %s1 = inlined_call_operand.hbm [shape: f32[48,384], index: 1, kind: input, shape index: {}]
  %s2 = inlined_call_operand.hbm [shape: f32[128,512], index: 2, kind: input, shape index: {}]
  %s3 = inlined_call_operand.hbm [shape: f32[8,512], index: 3, kind: output, shape index: {}]
  %s4 = sld [smem:[#allocation0]]
  $region34: #{tpu_custom_call.1} parent=0
    _
  %s6 = ssub.s32 1, %s4
  %s7 = scalar_select 0, %s6, %s4
  $region1: #{tpu_custom_call.1} parent=0
    #allocation2 [shape = 'u8[4096]{0}', space=vmem, size = 0x1000, scoped, tag = 'input window, operand 0, single buffered']
    #allocation3 [shape = 's32[1]{0}', space=sflag, size = 0x4, scoped, tag = 'scoped memory for tpu_custom_call.1']
    #allocation4 [shape = 's32[1]{0}', space=sflag, size = 0x4, scoped, tag = 'scoped memory for tpu_custom_call.1']
    #allocation5 [shape = 'u8[73728]{0}', space=vmem, size = 0x12000, scoped, tag = 'input window, operand 1, single buffered']
    #allocation6 [shape = 's32[1]{0}', space=sflag, size = 0x4, scoped, tag = 'scoped memory for tpu_custom_call.1']
    #allocation7 [shape = 'u8[262144]{0}', space=vmem, size = 0x40000, scoped, tag = 'input window, operand 2, single buffered']
    #allocation8 [shape = 'u8[16384]{0}', space=vmem, size = 0x4000, scoped, tag = 'output window, operand 0, single buffered']
    %8 = vsyncpa [#allocation3], 0
    %9 = vsyncpa [#allocation6], 0
    %10 = vsyncpa [#allocation4], 0
    // Predicated region
    $region2: #{tpu_custom_call.1} parent=1 // pred_check
      _
    $region3: #{tpu_custom_call.1} parent=1 // pred_check_branch
      %12 = sbr.rel (0) target = $region5
    $region4: #{tpu_custom_call.1} parent=1 // pred_region
      %s14 = ssub.s32 128, 128
      %15 = vsyncadd [#allocation3], %s14
      %s17 = sshll.u32 [#allocation2], 4
      %s18 = int_to_ptr.vmem [resolvable:$true] %s17
      %20 = dma.hbm_to_vmem [thread:$0]  %s0, 128, %s18, [#allocation3]
    $region5: #{tpu_custom_call.1} parent=1 // pred_fallthru
      _
    // Predicated region
    $region6: #{tpu_custom_call.1} parent=1 // pred_check
      _
    $region7: #{tpu_custom_call.1} parent=1 // pred_check_branch
      %22 = sbr.rel (0) target = $region9
    $region8: #{tpu_custom_call.1} parent=1 // pred_region
      %s24 = ssub.s32 2304, 2304
      %25 = vsyncadd [#allocation6], %s24
      %s26 = sshll.u32 [#allocation5], 4
      %s27 = int_to_ptr.vmem [resolvable:$true] %s26
      %32 = dma.hbm_to_vmem [thread:$0]  %s1, 2304, %s27, [#allocation6], 384, 384, 24
    $region9: #{tpu_custom_call.1} parent=1 // pred_fallthru
      _
    // Predicated region
    $region10: #{tpu_custom_call.1} parent=1 // pred_check
      _
    $region11: #{tpu_custom_call.1} parent=1 // pred_check_branch
      %34 = sbr.rel (0) target = $region13
    $region12: #{tpu_custom_call.1} parent=1 // pred_region
      %s36 = ssub.s32 8192, 8192
      %37 = vsyncadd [#allocation6], %s36
      %s38 = sshll.u32 [#allocation7], 4
      %s39 = int_to_ptr.vmem [resolvable:$true] %s38
      %44 = dma.hbm_to_vmem [thread:$0]  %s2, 8192, %s39, [#allocation6], 512, 512, 32
    $region13: #{tpu_custom_call.1} parent=1 // pred_fallthru
      _
    // Predicated region
    $region14: #{tpu_custom_call.1} parent=1 // pred_check
      _
    $region15: #{tpu_custom_call.1} parent=1 // pred_check_branch
      %46 = sbr.rel (0) target = $region17
    $region16: #{tpu_custom_call.1} parent=1 // pred_region
      %47 = dma.done [#allocation3], 128
    $region17: #{tpu_custom_call.1} parent=1 // pred_fallthru
      _
    // Predicated region
    $region18: #{tpu_custom_call.1} parent=1 // pred_check
      _
    $region19: #{tpu_custom_call.1} parent=1 // pred_check_branch
      %49 = sbr.rel (0) target = $region21
    $region20: #{tpu_custom_call.1} parent=1 // pred_region
      %50 = dma.done [#allocation6], 2304
    $region21: #{tpu_custom_call.1} parent=1 // pred_fallthru
      _
    // Predicated region
    $region22: #{tpu_custom_call.1} parent=1 // pred_check
      _
    $region23: #{tpu_custom_call.1} parent=1 // pred_check_branch
      %52 = sbr.rel (0) target = $region25
    $region24: #{tpu_custom_call.1} parent=1 // pred_region
      %53 = dma.done [#allocation6], 8192
    $region25: #{tpu_custom_call.1} parent=1 // pred_fallthru
      _
    %v54 = vld [vmem:[#allocation2] sm:$0xff]
    %v55 = vld [vmem:[#allocation5] sm:$0xff]
    %v56 = vld [vmem:[#allocation5 + $0x8] sm:$0xff]
    %v57 = vld [vmem:[#allocation5 + $0x10] sm:$0xff]
    %v58 = vld [vmem:[#allocation5 + $0x18] sm:$0xff]
    %v59 = vld [vmem:[#allocation5 + $0x20] sm:$0xff]
    %v60 = vld [vmem:[#allocation5 + $0x28] sm:$0xff]
    %v61 = vld [vmem:[#allocation5 + $0x30] sm:$0xff]
    %v62 = vld [vmem:[#allocation5 + $0x38] sm:$0xff]
    %v63 = vld [vmem:[#allocation5 + $0x40] sm:$0xff]
    %v64 = vld [vmem:[#allocation5 + $0x48] sm:$0xff]
    %v65 = vld [vmem:[#allocation5 + $0x50] sm:$0xff]
    %v66 = vld [vmem:[#allocation5 + $0x58] sm:$0xff]
    %v67 = vld [vmem:[#allocation5 + $0x60] sm:$0xff]
    %v68 = vld [vmem:[#allocation5 + $0x68] sm:$0xff]
    %v69 = vld [vmem:[#allocation5 + $0x70] sm:$0xff]
    %v70 = vld [vmem:[#allocation5 + $0x78] sm:$0xff]
    %v71 = vld [vmem:[#allocation5 + $0x80] sm:$0xff]
    %v72 = vld [vmem:[#allocation5 + $0x88] sm:$0xff]
    %vm73 = vcmask 392192
    %v75 = vsel %vm73, %v54, 0
    %77 = vmatprep.subr.mxu0 %v56
    %78 = vmatpush1.msra.mxu0 %v55
    %79 = vmatprep.subr.mxu0 %v59
    %80 = vmatpush1.msra.mxu0 %v58
    %81 = vmatprep.subr.mxu0 %v62
    %82 = vmatpush1.msra.mxu0 %v61
    %83 = vmatprep.subr.mxu0 %v65
    %84 = vmatpush1.msra.mxu0 %v64
    %85 = vmatprep.subr.mxu0 %v68
    %86 = vmatpush1.msra.mxu0 %v67
    %87 = vmatprep.subr.mxu0 %v71
    %88 = vmatpush1.msra.mxu0 %v70
    %89 = vmatprep.subr.mxu0 0.0
    %90 = vmatpush1.msra.mxu0 0.0
    %91 = vmatprep.subr.mxu0 0.0
    %92 = vmatpush1.msra.mxu0 0.0
    %93 = vmatprep.subr.mxu0 0.0
    %94 = vmatpush1.msra.mxu0 0.0
    %95 = vmatprep.subr.mxu0 0.0
    %96 = vmatpush1.msra.mxu0 0.0
    %97 = vmatprep.subr.mxu0 0.0
    %98 = vmatpush1.msra.mxu0 0.0
    %99 = vmatprep.subr.mxu0 0.0
    %100 = vmatpush1.msra.mxu0 0.0
    %101 = vmatprep.subr.mxu0 0.0
    %102 = vmatpush1.msra.mxu0 0.0
    %103 = vmatprep.subr.mxu0 0.0
    %104 = vmatpush1.msra.mxu0 0.0
    %105 = vmatprep.subr.mxu0 0.0
    %106 = vmatpush1.msra.mxu0 0.0
    %107 = vmatprep.subr.mxu0 0.0
    %108 = vmatpush1.msra.mxu0 0.0
    %109 = vmatprep.subr.mxu0 0.0
    %110 = vmatpush1.msra.mxu0 0.0
    %111 = vmatprep.subr.mxu0 0.0
    %112 = vmatpush1.msra.mxu0 0.0
    %113 = vmatprep.subr.mxu0 0.0
    %114 = vmatpush1.msra.mxu0 0.0
    %115 = vmatprep.subr.mxu0 0.0
    %116 = vmatpush1.msra.mxu0 0.0
    %117 = vmatprep.subr.mxu0 0.0
    %118 = vmatpush1.msra.mxu0 0.0
    %119 = vmatprep.subr.mxu0 0.0
    %120 = vmatpush1.msra.mxu0 0.0
    %121 = vmatprep.subr.mxu0 0.0
    %122 = vmatpush1.msra.mxu0 0.0
    %123 = vmatprep.subr.mxu0 0.0
    %124 = vmatpush1.msra.mxu0 0.0
    %125 = vmatprep.subr.mxu0 0.0
    %126 = vmatpush1.msra.mxu0 0.0
    %127 = vmatprep.subr.mxu0 0.0
    %128 = vmatpush1.msra.mxu0 0.0
    %129 = vmatprep.subr.mxu0 0.0
    %130 = vmatpush1.msra.mxu0 0.0
    %131 = vmatprep.subr.mxu0 0.0
    %132 = vmatpush1.msra.mxu0 0.0
    %133 = vmatprep.subr.mxu0 0.0
    %134 = vmatpush1.msra.mxu0 0.0
    %135 = vmatprep.subr.mxu0 0.0
    %136 = vmatpush1.msra.mxu0 0.0
    %137 = vmatprep.subr.mxu0 0.0
    %138 = vmatpush1.msra.mxu0 0.0
    %139 = vmatprep.subr.mxu0 0.0
    %140 = vmatpush1.msra.mxu0 0.0
    %141 = vmatprep.mubr.f32.mxu0 0.0
    %142 = vmatmul.mubr.f32.gmra.mrb[0].mxu0 %v75
    %v143 = vpop.f32.mrb[0].mxu0
    %v144 = vadd.f32 0.0, %v143
    %v145 = vpop.f32.mrb[0].mxu0
    %v146 = vadd.f32 0.0, %v145
    %147 = vdwg.mxu0
    %148 = vmatprep.subr.mxu0 0.0
    %149 = vmatpush1.msra.mxu0 %v57
    %150 = vmatprep.subr.mxu0 0.0
    %151 = vmatpush1.msra.mxu0 %v60
    %152 = vmatprep.subr.mxu0 0.0
    %153 = vmatpush1.msra.mxu0 %v63
    %154 = vmatprep.subr.mxu0 0.0
    %155 = vmatpush1.msra.mxu0 %v66
    %156 = vmatprep.subr.mxu0 0.0
    %157 = vmatpush1.msra.mxu0 %v69
    %158 = vmatprep.subr.mxu0 0.0
    %159 = vmatpush1.msra.mxu0 %v72
    %160 = vmatprep.subr.mxu0 0.0
    %161 = vmatpush1.msra.mxu0 0.0
    %162 = vmatprep.subr.mxu0 0.0
    %163 = vmatpush1.msra.mxu0 0.0
    %164 = vmatprep.subr.mxu0 0.0
    %165 = vmatpush1.msra.mxu0 0.0
    %166 = vmatprep.subr.mxu0 0.0
    %167 = vmatpush1.msra.mxu0 0.0
    %168 = vmatprep.subr.mxu0 0.0
    %169 = vmatpush1.msra.mxu0 0.0
    %170 = vmatprep.subr.mxu0 0.0
    %171 = vmatpush1.msra.mxu0 0.0
    %172 = vmatprep.subr.mxu0 0.0
    %173 = vmatpush1.msra.mxu0 0.0
    %174 = vmatprep.subr.mxu0 0.0
    %175 = vmatpush1.msra.mxu0 0.0
    %176 = vmatprep.subr.mxu0 0.0
    %177 = vmatpush1.msra.mxu0 0.0
    %178 = vmatprep.subr.mxu0 0.0
    %179 = vmatpush1.msra.mxu0 0.0
    %180 = vmatprep.subr.mxu0 0.0
    %181 = vmatpush1.msra.mxu0 0.0
    %182 = vmatprep.subr.mxu0 0.0
    %183 = vmatpush1.msra.mxu0 0.0
    %184 = vmatprep.subr.mxu0 0.0
    %185 = vmatpush1.msra.mxu0 0.0
    %186 = vmatprep.subr.mxu0 0.0
    %187 = vmatpush1.msra.mxu0 0.0
    %188 = vmatprep.subr.mxu0 0.0
    %189 = vmatpush1.msra.mxu0 0.0
    %190 = vmatprep.subr.mxu0 0.0
    %191 = vmatpush1.msra.mxu0 0.0
    %192 = vmatprep.subr.mxu0 0.0
    %193 = vmatpush1.msra.mxu0 0.0
    %194 = vmatprep.subr.mxu0 0.0
    %195 = vmatpush1.msra.mxu0 0.0
    %196 = vmatprep.subr.mxu0 0.0
    %197 = vmatpush1.msra.mxu0 0.0
    %198 = vmatprep.subr.mxu0 0.0
    %199 = vmatpush1.msra.mxu0 0.0
    %200 = vmatprep.subr.mxu0 0.0
    %201 = vmatpush1.msra.mxu0 0.0
    %202 = vmatprep.subr.mxu0 0.0
    %203 = vmatpush1.msra.mxu0 0.0
    %204 = vmatprep.subr.mxu0 0.0
    %205 = vmatpush1.msra.mxu0 0.0
    %206 = vmatprep.subr.mxu0 0.0
    %207 = vmatpush1.msra.mxu0 0.0
    %208 = vmatprep.subr.mxu0 0.0
    %209 = vmatpush1.msra.mxu0 0.0
    %210 = vmatprep.subr.mxu0 0.0
    %211 = vmatpush1.msra.mxu0 0.0
    %212 = vmatprep.mubr.f32.mxu0 0.0
    %213 = vmatmul.mubr.f32.gmra.mrb[0].mxu0 %v75
    %v214 = vpop.f32.mrb[0].mxu0
    %v215 = vadd.f32 0.0, %v214
    %v216 = vpop.f32.mrb[0].mxu0
    %217 = vdwg.mxu0
    %v218 = vlaneseq
    %v219 = vand.u32 %v218, 127
    %v220 = vand.u32 %v219, 7
    %v221 = vand.u32 %v220, 1
    %vm222 = vcmp.eq.s32.totalorder %v221, 1
    %v223 = vmin.f32 %v144, 1e+30
    %v224 = vsel %vm222, 1, 0
    %vm225 = vcmp.eq.s32.totalorder %v224, 1
    %v226 = vsel %vm225, %v223, 1e+30
    %v227 = vmax.f32 %v144, -1e+30
    %v228 = vsel %vm225, -1e+30, %v227
    %v229 = vshra.s32 %v220, 1
    %v230 = vand.u32 %v229, 1
    %vm231 = vcmp.eq.s32.totalorder %v230, 1
    %v232 = vmin.f32 %v226, %v146
    %v233 = vsel %vm231, 1, 0
    %vm234 = vcmp.eq.s32.totalorder %v233, 1
    %v235 = vsel %vm234, %v232, %v226
    %v236 = vmax.f32 %v228, %v146
    %v237 = vsel %vm234, %v228, %v236
    %v238 = vshra.s32 %v220, 2
    %v239 = vand.u32 %v238, 1
    %vm240 = vcmp.eq.s32.totalorder %v239, 1
    %v241 = vmin.f32 %v235, %v215
    %v242 = vsel %vm240, 1, 0
    %vm243 = vcmp.eq.s32.totalorder %v242, 1
    %v244 = vsel %vm243, %v241, %v235
    %v245 = vmax.f32 %v237, %v215
    %v246 = vsel %vm243, %v237, %v245
    %v247 = vsub.f32 %v244, %v246
    %v248 = vmax.f32 %v247, 0.0
    %vm249 = vcmp.eq.s32.totalorder %v220, 7
    %v250 = vsel %vm249, 1, 0
    %vm251 = vcmp.eq.s32.totalorder %v250, 1
    %v252 = vsel %vm251, %v244, %v248
    %v253 = vld [vmem:[#allocation7] sm:$0xff]
    %v254 = vld [vmem:[#allocation7 + $0x8] sm:$0xff]
    %v255 = vld [vmem:[#allocation7 + $0x10] sm:$0xff]
    %v256 = vld [vmem:[#allocation7 + $0x18] sm:$0xff]
    %v257 = vld [vmem:[#allocation7 + $0x20] sm:$0xff]
    %v258 = vld [vmem:[#allocation7 + $0x28] sm:$0xff]
    %v259 = vld [vmem:[#allocation7 + $0x30] sm:$0xff]
    %v260 = vld [vmem:[#allocation7 + $0x38] sm:$0xff]
    %v261 = vld [vmem:[#allocation7 + $0x40] sm:$0xff]
    %v262 = vld [vmem:[#allocation7 + $0x48] sm:$0xff]
    %v263 = vld [vmem:[#allocation7 + $0x50] sm:$0xff]
    %v264 = vld [vmem:[#allocation7 + $0x58] sm:$0xff]
    %v265 = vld [vmem:[#allocation7 + $0x60] sm:$0xff]
    %v266 = vld [vmem:[#allocation7 + $0x68] sm:$0xff]
    %v267 = vld [vmem:[#allocation7 + $0x70] sm:$0xff]
    %v268 = vld [vmem:[#allocation7 + $0x78] sm:$0xff]
    %v269 = vld [vmem:[#allocation7 + $0x80] sm:$0xff]
    %v270 = vld [vmem:[#allocation7 + $0x88] sm:$0xff]
    %v271 = vld [vmem:[#allocation7 + $0x90] sm:$0xff]
    %v272 = vld [vmem:[#allocation7 + $0x98] sm:$0xff]
    %v273 = vld [vmem:[#allocation7 + $0xa0] sm:$0xff]
    %v274 = vld [vmem:[#allocation7 + $0xa8] sm:$0xff]
    %v275 = vld [vmem:[#allocation7 + $0xb0] sm:$0xff]
    %v276 = vld [vmem:[#allocation7 + $0xb8] sm:$0xff]
    %v277 = vld [vmem:[#allocation7 + $0xc0] sm:$0xff]
    %v278 = vld [vmem:[#allocation7 + $0xc8] sm:$0xff]
    %v279 = vld [vmem:[#allocation7 + $0xd0] sm:$0xff]
    %v280 = vld [vmem:[#allocation7 + $0xd8] sm:$0xff]
    %v281 = vld [vmem:[#allocation7 + $0xe0] sm:$0xff]
    %v282 = vld [vmem:[#allocation7 + $0xe8] sm:$0xff]
    %v283 = vld [vmem:[#allocation7 + $0xf0] sm:$0xff]
    %v284 = vld [vmem:[#allocation7 + $0xf8] sm:$0xff]
    %v285 = vld [vmem:[#allocation7 + $0x100] sm:$0xff]
    %v286 = vld [vmem:[#allocation7 + $0x108] sm:$0xff]
    %v287 = vld [vmem:[#allocation7 + $0x110] sm:$0xff]
    %v288 = vld [vmem:[#allocation7 + $0x118] sm:$0xff]
    %v289 = vld [vmem:[#allocation7 + $0x120] sm:$0xff]
    %v290 = vld [vmem:[#allocation7 + $0x128] sm:$0xff]
    %v291 = vld [vmem:[#allocation7 + $0x130] sm:$0xff]
    %v292 = vld [vmem:[#allocation7 + $0x138] sm:$0xff]
    %v293 = vld [vmem:[#allocation7 + $0x140] sm:$0xff]
    %v294 = vld [vmem:[#allocation7 + $0x148] sm:$0xff]
    %v295 = vld [vmem:[#allocation7 + $0x150] sm:$0xff]
    %v296 = vld [vmem:[#allocation7 + $0x158] sm:$0xff]
    %v297 = vld [vmem:[#allocation7 + $0x160] sm:$0xff]
    %v298 = vld [vmem:[#allocation7 + $0x168] sm:$0xff]
    %v299 = vld [vmem:[#allocation7 + $0x170] sm:$0xff]
    %v300 = vld [vmem:[#allocation7 + $0x178] sm:$0xff]
    %v301 = vld [vmem:[#allocation7 + $0x180] sm:$0xff]
    %v302 = vld [vmem:[#allocation7 + $0x188] sm:$0xff]
    %v303 = vld [vmem:[#allocation7 + $0x190] sm:$0xff]
    %v304 = vld [vmem:[#allocation7 + $0x198] sm:$0xff]
    %v305 = vld [vmem:[#allocation7 + $0x1a0] sm:$0xff]
    %v306 = vld [vmem:[#allocation7 + $0x1a8] sm:$0xff]
    %v307 = vld [vmem:[#allocation7 + $0x1b0] sm:$0xff]
    %v308 = vld [vmem:[#allocation7 + $0x1b8] sm:$0xff]
    %v309 = vld [vmem:[#allocation7 + $0x1c0] sm:$0xff]
    %v310 = vld [vmem:[#allocation7 + $0x1c8] sm:$0xff]
    %v311 = vld [vmem:[#allocation7 + $0x1d0] sm:$0xff]
    %v312 = vld [vmem:[#allocation7 + $0x1d8] sm:$0xff]
    %v313 = vld [vmem:[#allocation7 + $0x1e0] sm:$0xff]
    %v314 = vld [vmem:[#allocation7 + $0x1e8] sm:$0xff]
    %v315 = vld [vmem:[#allocation7 + $0x1f0] sm:$0xff]
    %v316 = vld [vmem:[#allocation7 + $0x1f8] sm:$0xff]
    %317 = vmatprep.subr.mxu0 %v254
    %318 = vmatpush1.msra.mxu0 %v253
    %319 = vmatprep.subr.mxu0 %v258
    %320 = vmatpush1.msra.mxu0 %v257
    %321 = vmatprep.subr.mxu0 %v262
    %322 = vmatpush1.msra.mxu0 %v261
    %323 = vmatprep.subr.mxu0 %v266
    %324 = vmatpush1.msra.mxu0 %v265
    %325 = vmatprep.subr.mxu0 %v270
    %326 = vmatpush1.msra.mxu0 %v269
    %327 = vmatprep.subr.mxu0 %v274
    %328 = vmatpush1.msra.mxu0 %v273
    %329 = vmatprep.subr.mxu0 %v278
    %330 = vmatpush1.msra.mxu0 %v277
    %331 = vmatprep.subr.mxu0 %v282
    %332 = vmatpush1.msra.mxu0 %v281
    %333 = vmatprep.subr.mxu0 %v286
    %334 = vmatpush1.msra.mxu0 %v285
    %335 = vmatprep.subr.mxu0 %v290
    %336 = vmatpush1.msra.mxu0 %v289
    %337 = vmatprep.subr.mxu0 %v294
    %338 = vmatpush1.msra.mxu0 %v293
    %339 = vmatprep.subr.mxu0 %v298
    %340 = vmatpush1.msra.mxu0 %v297
    %341 = vmatprep.subr.mxu0 %v302
    %342 = vmatpush1.msra.mxu0 %v301
    %343 = vmatprep.subr.mxu0 %v306
    %344 = vmatpush1.msra.mxu0 %v305
    %345 = vmatprep.subr.mxu0 %v310
    %346 = vmatpush1.msra.mxu0 %v309
    %347 = vmatprep.subr.mxu0 %v314
    %348 = vmatpush1.msra.mxu0 %v313
    %349 = vmatprep.subr.mxu0 0.0
    %350 = vmatpush1.msra.mxu0 0.0
    %351 = vmatprep.subr.mxu0 0.0
    %352 = vmatpush1.msra.mxu0 0.0
    %353 = vmatprep.subr.mxu0 0.0
    %354 = vmatpush1.msra.mxu0 0.0
    %355 = vmatprep.subr.mxu0 0.0
    %356 = vmatpush1.msra.mxu0 0.0
    %357 = vmatprep.subr.mxu0 0.0
    %358 = vmatpush1.msra.mxu0 0.0
    %359 = vmatprep.subr.mxu0 0.0
    %360 = vmatpush1.msra.mxu0 0.0
    %361 = vmatprep.subr.mxu0 0.0
    %362 = vmatpush1.msra.mxu0 0.0
    %363 = vmatprep.subr.mxu0 0.0
    %364 = vmatpush1.msra.mxu0 0.0
    %365 = vmatprep.subr.mxu0 0.0
    %366 = vmatpush1.msra.mxu0 0.0
    %367 = vmatprep.subr.mxu0 0.0
    %368 = vmatpush1.msra.mxu0 0.0
    %369 = vmatprep.subr.mxu0 0.0
    %370 = vmatpush1.msra.mxu0 0.0
    %371 = vmatprep.subr.mxu0 0.0
    %372 = vmatpush1.msra.mxu0 0.0
    %373 = vmatprep.subr.mxu0 0.0
    %374 = vmatpush1.msra.mxu0 0.0
    %375 = vmatprep.subr.mxu0 0.0
    %376 = vmatpush1.msra.mxu0 0.0
    %377 = vmatprep.subr.mxu0 0.0
    %378 = vmatpush1.msra.mxu0 0.0
    %379 = vmatprep.subr.mxu0 0.0
    %380 = vmatpush1.msra.mxu0 0.0
    %381 = vmatprep.mubr.f32.mxu0 0.0
    %382 = vmatmul.mubr.f32.gmra.mrb[0].mxu0 %v252
    %v383 = vpop.f32.mrb[0].mxu0
    %v384 = vadd.f32 0.0, %v383
    %v385 = vpop.f32.mrb[0].mxu0
    %v386 = vadd.f32 0.0, %v385
    %387 = vdwg.mxu0
    %388 = vmatprep.subr.mxu0 %v256
    %389 = vmatpush1.msra.mxu0 %v255
    %390 = vmatprep.subr.mxu0 %v260
    %391 = vmatpush1.msra.mxu0 %v259
    %392 = vmatprep.subr.mxu0 %v264
    %393 = vmatpush1.msra.mxu0 %v263
    %394 = vmatprep.subr.mxu0 %v268
    %395 = vmatpush1.msra.mxu0 %v267
    %396 = vmatprep.subr.mxu0 %v272
    %397 = vmatpush1.msra.mxu0 %v271
    %398 = vmatprep.subr.mxu0 %v276
    %399 = vmatpush1.msra.mxu0 %v275
    %400 = vmatprep.subr.mxu0 %v280
    %401 = vmatpush1.msra.mxu0 %v279
    %402 = vmatprep.subr.mxu0 %v284
    %403 = vmatpush1.msra.mxu0 %v283
    %404 = vmatprep.subr.mxu0 %v288
    %405 = vmatpush1.msra.mxu0 %v287
    %406 = vmatprep.subr.mxu0 %v292
    %407 = vmatpush1.msra.mxu0 %v291
    %408 = vmatprep.subr.mxu0 %v296
    %409 = vmatpush1.msra.mxu0 %v295
    %410 = vmatprep.subr.mxu0 %v300
    %411 = vmatpush1.msra.mxu0 %v299
    %412 = vmatprep.subr.mxu0 %v304
    %413 = vmatpush1.msra.mxu0 %v303
    %414 = vmatprep.subr.mxu0 %v308
    %415 = vmatpush1.msra.mxu0 %v307
    %416 = vmatprep.subr.mxu0 %v312
    %417 = vmatpush1.msra.mxu0 %v311
    %418 = vmatprep.subr.mxu0 %v316
    %419 = vmatpush1.msra.mxu0 %v315
    %420 = vmatprep.subr.mxu0 0.0
    %421 = vmatpush1.msra.mxu0 0.0
    %422 = vmatprep.subr.mxu0 0.0
    %423 = vmatpush1.msra.mxu0 0.0
    %424 = vmatprep.subr.mxu0 0.0
    %425 = vmatpush1.msra.mxu0 0.0
    %426 = vmatprep.subr.mxu0 0.0
    %427 = vmatpush1.msra.mxu0 0.0
    %428 = vmatprep.subr.mxu0 0.0
    %429 = vmatpush1.msra.mxu0 0.0
    %430 = vmatprep.subr.mxu0 0.0
    %431 = vmatpush1.msra.mxu0 0.0
    %432 = vmatprep.subr.mxu0 0.0
    %433 = vmatpush1.msra.mxu0 0.0
    %434 = vmatprep.subr.mxu0 0.0
    %435 = vmatpush1.msra.mxu0 0.0
    %436 = vmatprep.subr.mxu0 0.0
    %437 = vmatpush1.msra.mxu0 0.0
    %438 = vmatprep.subr.mxu0 0.0
    %439 = vmatpush1.msra.mxu0 0.0
    %440 = vmatprep.subr.mxu0 0.0
    %441 = vmatpush1.msra.mxu0 0.0
    %442 = vmatprep.subr.mxu0 0.0
    %443 = vmatpush1.msra.mxu0 0.0
    %444 = vmatprep.subr.mxu0 0.0
    %445 = vmatpush1.msra.mxu0 0.0
    %446 = vmatprep.subr.mxu0 0.0
    %447 = vmatpush1.msra.mxu0 0.0
    %448 = vmatprep.subr.mxu0 0.0
    %449 = vmatpush1.msra.mxu0 0.0
    %450 = vmatprep.subr.mxu0 0.0
    %451 = vmatpush1.msra.mxu0 0.0
    %452 = vmatprep.mubr.f32.mxu0 0.0
    %453 = vmatmul.mubr.f32.gmra.mrb[0].mxu0 %v252
    %v454 = vpop.f32.mrb[0].mxu0
    %v455 = vadd.f32 0.0, %v454
    %v456 = vpop.f32.mrb[0].mxu0
    %v457 = vadd.f32 0.0, %v456
    %458 = vdwg.mxu0
    %459 = vst [vmem:[#allocation8] sm:$0xff] %v384
    %460 = vst [vmem:[#allocation8 + $0x8] sm:$0xff] %v386
    %461 = vst [vmem:[#allocation8 + $0x10] sm:$0xff] %v455
    %462 = vst [vmem:[#allocation8 + $0x18] sm:$0xff] %v457
    // Predicated region
    $region26: #{tpu_custom_call.1} parent=1 // pred_check
      _
    $region27: #{tpu_custom_call.1} parent=1 // pred_check_branch
      %464 = sbr.rel (0) target = $region29
    $region28: #{tpu_custom_call.1} parent=1 // pred_region
      %s466 = ssub.s32 512, 512
      %467 = vsyncadd [#allocation4], %s466
      %s469 = sshll.u32 [#allocation8], 4
      %s470 = int_to_ptr.vmem [resolvable:$true] %s469
      %472 = dma.vmem_to_hbm [thread:$0]  %s470, 512, %s3, [#allocation4]
    $region29: #{tpu_custom_call.1} parent=1 // pred_fallthru
      _
    // Predicated region
    $region30: #{tpu_custom_call.1} parent=1 // pred_check
      _
    $region31: #{tpu_custom_call.1} parent=1 // pred_check_branch
      %474 = sbr.rel (0) target = $region33
    $region32: #{tpu_custom_call.1} parent=1 // pred_region
      %475 = dma.done [#allocation4], 512
    $region33: #{tpu_custom_call.1} parent=1 // pred_fallthru
      _
    %476 = vsyncpa [#allocation3], 1
    %477 = vsyncpa [#allocation6], 1
    %478 = vsyncpa [#allocation4], 1

</llo_original>
